<compile_context>
chip_gen: v7x
topology: tpu7x:2x2x1
jax: 0.10.0
libtpu: 0.0.40
codegen_flags: <defaults>
</compile_context>

<pallas_src>
from functools import partial

import numpy as np
import jax
import jax.numpy as jnp
from jax import lax
from jax.experimental import pallas as pl
from jax.experimental.pallas import tpu as pltpu

V_THRESHOLD = 1.0
BN_EPS = 1e-5
BN_SCALE = float(1.0 / np.sqrt(1.0 + BN_EPS))  # eval-mode BN at init


def _round_up(x, m):
    return (x + m - 1) // m * m


# ---------------------------------------------------------------------------
# Pallas kernel 1: matmul, bf16 MXU operands, f32 output, resident weight.
#   A: [M, K] x B: [K, N] -> [M, N] f32.  K collapsed into one block; grid is
#   (N-tiles outer, M-tiles inner) so the weight block stays resident in VMEM
#   across the inner M loop.
# ---------------------------------------------------------------------------
def _matmul_kernel(a_ref, b_ref, o_ref):
    o_ref[...] = jnp.dot(a_ref[...], b_ref[...],
                         preferred_element_type=jnp.float32)


def _pick_tile_m(M):
    """Pick tm (multiple of 16, <= 512) bounding padded work."""
    Mp0 = _round_up(M, 16)
    if Mp0 <= 512:
        return Mp0, Mp0
    nt = -(-Mp0 // 512)
    tm = _round_up(-(-Mp0 // nt), 16)
    Mp = _round_up(Mp0, tm)
    return tm, Mp


def matmul_pallas(a, w_padded, n_out):
    """a: [M, K] (any float dtype), w_padded: [Kp, Np] bf16 (pre-padded at
    init).  Returns [M, n_out] f32."""
    M, K = a.shape
    Kp, Np = w_padded.shape
    assert K <= Kp and n_out <= Np
    a16 = a.astype(jnp.bfloat16)
    if Kp != K:
        a16 = jnp.pad(a16, ((0, 0), (0, Kp - K)))
    tm, Mp = _pick_tile_m(M)
    if Mp != M:
        a16 = jnp.pad(a16, ((0, Mp - M), (0, 0)))
    tn = min(256, Np)

    out = pl.pallas_call(
        _matmul_kernel,
        out_shape=jax.ShapeDtypeStruct((Mp, Np), jnp.float32),
        grid_spec=pltpu.PrefetchScalarGridSpec(
            num_scalar_prefetch=0,
            grid=(Np // tn, Mp // tm),              # j (weight tile) outer, i inner
            in_specs=[pl.BlockSpec((tm, Kp), lambda j, i: (i, 0)),
                      pl.BlockSpec((Kp, tn), lambda j, i: (0, j))],   # resident
            out_specs=pl.BlockSpec((tm, tn), lambda j, i: (i, j))),
        compiler_params=pltpu.CompilerParams(
            dimension_semantics=("parallel", "parallel"),
            vmem_limit_bytes=32 * 1024 * 1024),
    )(a16, w_padded)
    if Mp != M or Np != n_out:
        out = out[:M, :n_out]
    return out


# ---------------------------------------------------------------------------
# Pallas kernel 2: MultiStepIFNode (IF neuron, hard reset, v_th=1, v_reset=0).
# Tiles of (T, RB<=64, 128): v stays in <= 8 vregs; spikes stored as bf16
# (exact 0/1), membrane and math in f32.
# ---------------------------------------------------------------------------
def _if_kernel(x_ref, s_ref):
    T = x_ref.shape[0]
    v = jnp.zeros(x_ref.shape[1:], jnp.float32)
    for t in range(T):                       # T small & static -> unrolled
        h = v + x_ref[t].astype(jnp.float32)
        spike = h >= V_THRESHOLD
        s_ref[t] = spike.astype(s_ref.dtype)
        v = jnp.where(spike, 0.0, h)         # hard reset to 0


def _if_repeat_kernel(x_ref, s_ref):
    """Same IF dynamics but the (single-frame) input is reused at every time
    step, so the T-replicated tensor is never materialized in HBM."""
    T = s_ref.shape[0]
    xin = x_ref[...].astype(jnp.float32)
    v = jnp.zeros_like(xin)
    for t in range(T):
        h = v + xin
        spike = h >= V_THRESHOLD
        s_ref[t] = spike.astype(s_ref.dtype)
        v = jnp.where(spike, 0.0, h)


def _if_tiling(M):
    rows = pl.cdiv(M, 128)
    RB = min(64, _round_up(rows, 8))
    rows_p = _round_up(rows, RB)
    return rows, RB, rows_p


def if_neuron(x):
    """Multi-step IF spiking neuron over leading time axis. x: [T, ...] f32.
    Returns bf16 spikes of the same shape."""
    T = x.shape[0]
    orig_shape = x.shape
    flat = x.reshape(T, -1)
    M = flat.shape[1]
    rows, RB, rows_p = _if_tiling(M)
    padw = rows_p * 128 - M
    if padw:
        flat = jnp.pad(flat, ((0, 0), (0, padw)))
    x3 = flat.reshape(T, rows_p, 128)
    out = pl.pallas_call(
        _if_kernel,
        out_shape=jax.ShapeDtypeStruct((T, rows_p, 128), jnp.bfloat16),
        grid=(rows_p // RB,),
        in_specs=[pl.BlockSpec((T, RB, 128), lambda i: (0, i, 0))],
        out_specs=pl.BlockSpec((T, RB, 128), lambda i: (0, i, 0)),
        compiler_params=pltpu.CompilerParams(dimension_semantics=("parallel",)),
    )(x3)
    if padw:
        out = out.reshape(T, rows_p * 128)[:, :M]
    return out.reshape(orig_shape)


def if_neuron_repeat(x, T):
    """IF neuron fed the SAME frame at every time step (stem sn1 after the
    x.repeat(T,...) in PyTorch).  x: [...] f32 -> [T, ...] bf16 spikes."""
    orig_shape = x.shape
    flat = x.reshape(-1)
    M = flat.shape[0]
    rows, RB, rows_p = _if_tiling(M)
    padw = rows_p * 128 - M
    if padw:
        flat = jnp.pad(flat, (0, padw))
    x2 = flat.reshape(rows_p, 128)
    out = pl.pallas_call(
        _if_repeat_kernel,
        out_shape=jax.ShapeDtypeStruct((T, rows_p, 128), jnp.bfloat16),
        grid=(rows_p // RB,),
        in_specs=[pl.BlockSpec((RB, 128), lambda i: (i, 0))],
        out_specs=pl.BlockSpec((T, RB, 128), lambda i: (0, i, 0)),
        compiler_params=pltpu.CompilerParams(dimension_semantics=("parallel",)),
    )(x2)
    if padw:
        out = out.reshape(T, rows_p * 128)[:, :M]
    return out.reshape((T,) + orig_shape)


# ---------------------------------------------------------------------------
# Pallas kernel 3: fused  sn2 (IF)  +  x_acc += spike  +  connect(spike, ident)
# One streaming pass; spike/connect outputs bf16, x_acc stays f32.
# ---------------------------------------------------------------------------
def _connect(out, identity, f):
    if f == 'AND':
        return out * identity
    if f == 'IAND':
        return identity * (1.0 - out)
    if f == 'OR':
        return out + identity - identity * out
    if f == 'XOR':
        return identity * (1.0 - out) + out * (1.0 - identity)
    raise NotImplementedError(f)


def _if_residual_kernel(x_ref, id_ref, acc_ref, out_ref, accout_ref, *, connect_f):
    T = x_ref.shape[0]
    v = jnp.zeros(x_ref.shape[1:], jnp.float32)
    for t in range(T):
        h = v + x_ref[t].astype(jnp.float32)
        spike = h >= V_THRESHOLD
        s = spike.astype(jnp.float32)
        v = jnp.where(spike, 0.0, h)
        accout_ref[t] = acc_ref[t] + s
        ident = id_ref[t].astype(jnp.float32)
        out_ref[t] = _connect(s, ident, connect_f).astype(out_ref.dtype)


def if_residual(x, identity, x_acc, connect_f):
    """x (pre-activation, f32), identity (spikes), x_acc (f32 accumulator):
    identical shapes [T, ...].  Returns (out bf16, x_acc_new f32)."""
    T = x.shape[0]
    orig_shape = x.shape
    xf = x.reshape(T, -1).astype(jnp.float32)
    idf = identity.reshape(T, -1).astype(jnp.bfloat16)
    accf = x_acc.reshape(T, -1).astype(jnp.float32)
    M = xf.shape[1]
    rows, RB, rows_p = _if_tiling(M)
    padw = rows_p * 128 - M

    def to3(a):
        if padw:
            a = jnp.pad(a, ((0, 0), (0, padw)))
        return a.reshape(T, rows_p, 128)

    spec = pl.BlockSpec((T, RB, 128), lambda i: (0, i, 0))
    out3, acc3 = pl.pallas_call(
        partial(_if_residual_kernel, connect_f=connect_f),
        out_shape=(jax.ShapeDtypeStruct((T, rows_p, 128), jnp.bfloat16),
                   jax.ShapeDtypeStruct((T, rows_p, 128), jnp.float32)),
        grid=(rows_p // RB,),
        in_specs=[spec, spec, spec],
        out_specs=(spec, spec),
        compiler_params=pltpu.CompilerParams(dimension_semantics=("parallel",)),
    )(to3(xf), to3(idf), to3(accf))

    def back(a):
        if padw:
            a = a.reshape(T, rows_p * 128)[:, :M]
        return a.reshape(orig_shape)

    return back(out3), back(acc3)


# ---------------------------------------------------------------------------
# Convs (NHWC, im2col in bf16 + Pallas matmul).  Weights pre-packed at init.
# ---------------------------------------------------------------------------
def pack_weight(w_hwio):
    """HWIO conv weight -> dict with bf16 matmul matrix padded to 128."""
    kh, kw, cin, cout = w_hwio.shape
    K = kh * kw * cin
    wmat = w_hwio.reshape(K, cout).astype(jnp.bfloat16)
    Kp = _round_up(K, 128)
    Np = _round_up(cout, 128)
    if Kp != K or Np != cout:
        wmat = jnp.pad(wmat, ((0, Kp - K), (0, Np - cout)))
    return {'w': wmat, 'kh': kh, 'kw': kw, 'cout': cout}


def conv2d_nhwc(x, wp, stride=1, pad=0):
    """x: [B, H, W, Cin]; wp: packed weight; bias-free; returns f32 NHWC."""
    B, H, W, C = x.shape
    kh, kw = wp['kh'], wp['kw']
    x = x.astype(jnp.bfloat16)                 # halves im2col HBM traffic
    xp = jnp.pad(x, ((0, 0), (pad, pad), (pad, pad), (0, 0))) if pad else x
    Ho = (H + 2 * pad - kh) // stride + 1
    Wo = (W + 2 * pad - kw) // stride + 1
    cols = [xp[:, i:i + stride * Ho:stride, j:j + stride * Wo:stride, :]
            for i in range(kh) for j in range(kw)]
    patches = cols[0] if len(cols) == 1 else jnp.concatenate(cols, axis=-1)
    patches = patches.reshape(B * Ho * Wo, kh * kw * C)       # lane-dense rows
    y = matmul_pallas(patches, wp['w'], wp['cout'])            # [B*Ho*Wo, Cout] f32
    return y.reshape(B, Ho, Wo, wp['cout'])


def depthwise3x3_nhwc(x, w_dw, stride):
    """Depthwise 3x3, pad=1, as ONE fused grouped conv (no 9 HBM round trips).
    x: [B,H,W,C]; w_dw: [3,3,C]."""
    C = x.shape[-1]
    w = w_dw.reshape(3, 3, 1, C).astype(jnp.float32)
    return lax.conv_general_dilated(
        x.astype(jnp.float32), w,
        window_strides=(stride, stride), padding=((1, 1), (1, 1)),
        dimension_numbers=('NHWC', 'HWIO', 'NHWC'),
        feature_group_count=C)


def seq_conv(x, wp, stride=1, pad=0):
    """SeqToANNContainer conv: x [T,N,H,W,C] -> merge T,N -> conv -> split."""
    T, N = x.shape[:2]
    y = conv2d_nhwc(x.reshape((T * N,) + x.shape[2:]), wp, stride, pad)
    return y.reshape((T, N) + y.shape[1:])


def seq_depthwise(x, w_dw, stride):
    T, N = x.shape[:2]
    y = depthwise3x3_nhwc(x.reshape((T * N,) + x.shape[2:]), w_dw, stride)
    return y.reshape((T, N) + y.shape[1:])


# ---------------------------------------------------------------------------
# Parameter init (deterministic, kaiming-like convs, PyTorch-like fc).
# BN folded into the preceding conv (eval-mode stats at init).
# ---------------------------------------------------------------------------
def kaiming_conv_hwio(key, cout, cin, kh, kw):
    std = np.sqrt(2.0 / (cout * kh * kw))   # fan_out, relu
    return std * jax.random.normal(key, (kh, kw, cin, cout), jnp.float32)


def init_basic_block(key, inplanes, planes, stride):
    ks = jax.random.split(key, 5)
    p = {'stride': stride}
    p['conv1'] = pack_weight(kaiming_conv_hwio(ks[0], planes, inplanes, 3, 3) * BN_SCALE)
    p['conv2'] = pack_weight(kaiming_conv_hwio(ks[1], planes, planes, 3, 3) * BN_SCALE)
    p['has_down'] = (stride != 1) or (inplanes != planes)
    if p['has_down']:
        p['down'] = pack_weight(kaiming_conv_hwio(ks[2], planes, inplanes, 1, 1) * BN_SCALE)
        if stride != 1:
            # convpxp: depthwise 3x3 (no BN) -> 1x1 (BN folds into the 1x1 only)
            std = np.sqrt(2.0 / (inplanes * 9))
            p['pool_dw'] = std * jax.random.normal(ks[3], (3, 3, inplanes), jnp.float32)
        p['pool_pw'] = pack_weight(kaiming_conv_hwio(ks[4], planes, inplanes, 1, 1) * BN_SCALE)
    return p


def init_params(key, layers=(1, 1, 1, 1), num_classes=10):
    keys = jax.random.split(key, 8)
    params = {'conv1': pack_weight(kaiming_conv_hwio(keys[0], 64, 3, 7, 7) * BN_SCALE)}
    plan = [(64, 1), (128, 2), (256, 2), (512, 2)]
    inplanes = 64
    layer_params = []
    for li, ((planes, stride), nblocks) in enumerate(zip(plan, layers)):
        blks = []
        bkeys = jax.random.split(keys[1 + li], nblocks)
        for bi in range(nblocks):
            s = stride if bi == 0 else 1
            blks.append(init_basic_block(bkeys[bi], inplanes, planes, s))
            inplanes = planes
        layer_params.append(blks)
    params['layers'] = layer_params
    bound = 1.0 / np.sqrt(512.0)
    fc_w = jax.random.uniform(keys[5], (num_classes, 512), jnp.float32, -bound, bound)
    params['fc_wT'] = fc_w.T                                   # pre-transposed [512, classes]
    params['fc_b'] = jax.random.uniform(keys[6], (num_classes,), jnp.float32, -bound, bound)
    # fc_acc exists in the PyTorch module but is never used in forward().
    return params


# ---------------------------------------------------------------------------
# Forward pass (BasicBlock variant), NHWC spiking tensors [T, N, H, W, C]
# ---------------------------------------------------------------------------
def basic_block_forward(p, pair, connect_f):
    identity, x_acc = pair
    out = if_neuron(seq_conv(identity, p['conv1'], stride=p['stride'], pad=1))   # sn1
    x2 = seq_conv(out, p['conv2'], stride=1, pad=1)                              # conv2 (pre-sn2)
    if p['has_down']:
        identity = if_neuron(seq_conv(identity, p['down'], stride=p['stride'], pad=0))
        if p['stride'] != 1:
            xa = seq_depthwise(x_acc, p['pool_dw'], stride=p['stride'])
            xa = seq_conv(xa, p['pool_pw'], stride=1, pad=0)
        else:
            xa = seq_conv(x_acc, p['pool_pw'], stride=1, pad=0)
        x_acc = jax.nn.relu(xa)
    # fused Pallas kernel: sn2(x2), x_acc += spike, out = connect(spike, identity)
    out, x_acc = if_residual(x2, identity, x_acc, connect_f)
    return out, x_acc


def dsnn_forward(params, x, T, connect_f):
    # single layout change at the boundary: NCHW (PyTorch) -> NHWC (lane-dense)
    x = jnp.transpose(x, (0, 2, 3, 1))                         # [N, H, W, 3]
    x = conv2d_nhwc(x, params['conv1'], stride=2, pad=3)       # [N, H/2, W/2, 64] f32
    N = x.shape[0]
    # sn1 over T copies of the stem activation WITHOUT materializing the repeat
    x = if_neuron_repeat(x, T)                                 # [T, N, H/2, W/2, 64] bf16 spikes
    xm = x.reshape((T * N,) + x.shape[2:])
    xm = lax.reduce_window(xm, jnp.asarray(-jnp.inf, xm.dtype), lax.max,
                           (1, 3, 3, 1), (1, 2, 2, 1),
                           ((0, 0), (1, 1), (1, 1), (0, 0)))   # maxpool 3x3 s2 p1, NHWC
    x = xm.reshape((T, N) + xm.shape[1:])

    pair = (x, x)
    for layer_blocks in params['layers']:
        for blk in layer_blocks:
            pair = basic_block_forward(blk, pair, connect_f)
    feat_out, feat_acc = pair

    def head(f):
        pooled = f.astype(jnp.float32).mean(axis=(2, 3))   # adaptive avg pool (1,1): [T, N, C]
        avg = pooled.mean(axis=0)                          # mean over time: [N, C]
        # tiny [N,512]x[512,classes] matmul: plain XLA dot beats a Pallas launch
        return jnp.dot(avg, params['fc_wT'],
                       preferred_element_type=jnp.float32) + params['fc_b'][None, :]
        # forward uses self.fc for both heads (fc_acc unused), reproduced.

    return head(feat_out), head(feat_acc)


if __name__ == "__main__":
    key = jax.random.PRNGKey(0)
    pkey, xkey = jax.random.split(key)
    T = 2
    connect_f = 'AND'
    num_classes = 10
    params = init_params(pkey, layers=(1, 1, 1, 1), num_classes=num_classes)
    x = jax.random.normal(xkey, (2, 3, 32, 32), jnp.float32)   # NCHW like PyTorch
    out, out_acc = dsnn_forward(params, x, T, connect_f)
    jax.block_until_ready(out)
    jax.block_until_ready(out_acc)
    assert out.shape == (2, num_classes) and out_acc.shape == (2, num_classes)
    assert jnp.all(jnp.isfinite(out)) and jnp.all(jnp.isfinite(out_acc))
    print("KERNEL_OK")
</pallas_src>

<mosaic_0001>
module attributes {stable_mosaic.version = 11 : i64} {
  func.func @_matmul_kernel(%arg0: i32, %arg1: i32, %arg2: memref<512x256xbf16, #tpu.memory_space<vmem>>, %arg3: memref<256x128xbf16, #tpu.memory_space<vmem>>, %arg4: memref<512x128xf32, #tpu.memory_space<vmem>>) attributes {dimension_semantics = [#tpu.dimension_semantics<parallel>, #tpu.dimension_semantics<parallel>], iteration_bounds = array<i64: 1, 1>, scalar_prefetch = 0 : i64, scratch_operands = 0 : i64, tpu.core_type = #tpu.core_type<tc>, window_params = [{transform_indices = @transform_0, window_bounds = array<i64: 512, 256>}, {transform_indices = @transform_1, window_bounds = array<i64: 256, 128>}, {transform_indices = @transform_2, window_bounds = array<i64: 512, 128>}]} {
    %c0 = arith.constant 0 : index
    %c0_0 = arith.constant 0 : index
    %0 = vector.load %arg2[%c0, %c0_0] : memref<512x256xbf16, #tpu.memory_space<vmem>>, vector<512x256xbf16>
    %c0_1 = arith.constant 0 : index
    %c0_2 = arith.constant 0 : index
    %1 = vector.load %arg3[%c0_1, %c0_2] : memref<256x128xbf16, #tpu.memory_space<vmem>>, vector<256x128xbf16>
    %cst = arith.constant dense<0.000000e+00> : vector<512x128xf32>
    %2 = tpu.matmul %0, %1, %cst {dimension_numbers = #tpu.dot_dimension_numbers<[1], [0], [0], [1], [0, 0, 1, 1], [], []>} : vector<512x256xbf16>, vector<256x128xbf16>, vector<512x128xf32> -> vector<512x128xf32>
    %c0_3 = arith.constant 0 : index
    %c0_4 = arith.constant 0 : index
    %3 = vector.load %arg4[%c0_3, %c0_4] : memref<512x128xf32, #tpu.memory_space<vmem>>, vector<512x128xf32>
    tpu.vector_store %arg4[%c0_3, %c0_4], %2 {strides = array<i32>} : memref<512x128xf32, #tpu.memory_space<vmem>>, vector<512x128xf32>,
    return
  }
  func.func @transform_0(%arg0: i32, %arg1: i32) -> (i32, i32) {
    %c0_i32 = arith.constant 0 : i32
    %c0_i32_0 = arith.constant 0 : i32
    return %arg1, %c0_i32 : i32, i32
  }
  func.func @transform_1(%arg0: i32, %arg1: i32) -> (i32, i32) {
    %c0_i32 = arith.constant 0 : i32
    %c0_i32_0 = arith.constant 0 : i32
    return %c0_i32, %arg0 : i32, i32
  }
  func.func @transform_2(%arg0: i32, %arg1: i32) -> (i32, i32) {
    %c0_i32 = arith.constant 0 : i32
    return %arg1, %arg0 : i32, i32
  }
}

</mosaic_0001>

<llo_original>
// kernel: tpu_custom_call.1
$region0: #{tpu_custom_call.1}
  #allocation0 [shape = 'u32[]', space=smem, size = 0x4, offset = 0x4, fixed_abs, tag = 'smem constant byte address 0x4 - core index']
  #allocation1 [shape = 'u32[144,128]{1,0:T(1,128)}', space=vmem, size = 0x12000, scoped, tag = 'internal scratch']
  %s0 = inlined_call_operand.hbm [shape: bf16[512,256], index: 0, kind: input, shape index: {}]
  %s1 = inlined_call_operand.hbm [shape: bf16[256,128], index: 1, kind: input, shape index: {}]
  %s2 = inlined_call_operand.hbm [shape: f32[512,128], index: 2, kind: output, shape index: {}]
  %s3 = sld [smem:[#allocation0]]
  $region26: #{tpu_custom_call.1} parent=0
    _
  %s5 = ssub.s32 1, %s3
  %s6 = scalar_select 0, %s5, %s3
  $region1: #{tpu_custom_call.1} parent=0
    #allocation2 [shape = 'u8[262144]{0}', space=vmem, size = 0x40000, scoped, tag = 'input window, operand 0, single buffered']
    #allocation3 [shape = 's32[1]{0}', space=sflag, size = 0x4, scoped, tag = 'scoped memory for tpu_custom_call.1']
    #allocation4 [shape = 's32[1]{0}', space=sflag, size = 0x4, scoped, tag = 'scoped memory for tpu_custom_call.1']
    #allocation5 [shape = 'u8[65536]{0}', space=vmem, size = 0x10000, scoped, tag = 'input window, operand 1, single buffered']
    #allocation6 [shape = 's32[1]{0}', space=sflag, size = 0x4, scoped, tag = 'scoped memory for tpu_custom_call.1']
    #allocation7 [shape = 'u8[262144]{0}', space=vmem, size = 0x40000, scoped, tag = 'output window, operand 0, single buffered']
    %7 = vsyncpa [#allocation3], 0
    %8 = vsyncpa [#allocation6], 0
    %9 = vsyncpa [#allocation4], 0
    // Predicated region
    $region2: #{tpu_custom_call.1} parent=1 // pred_check
      _
    $region3: #{tpu_custom_call.1} parent=1 // pred_check_branch
      %11 = sbr.rel (0) target = $region5
    $region4: #{tpu_custom_call.1} parent=1 // pred_region
      %s13 = ssub.s32 8192, 8192
      %14 = vsyncadd [#allocation3], %s13
      %s15 = sshll.u32 [#allocation2], 4
      %s16 = int_to_ptr.vmem [resolvable:$true] %s15
      %21 = dma.hbm_to_vmem [thread:$0]  %s0, 8192, %s16, [#allocation3], 128, 128, 8
    $region5: #{tpu_custom_call.1} parent=1 // pred_fallthru
      _
    // Predicated region
    $region6: #{tpu_custom_call.1} parent=1 // pred_check
      _
    $region7: #{tpu_custom_call.1} parent=1 // pred_check_branch
      %23 = sbr.rel (0) target = $region9
    $region8: #{tpu_custom_call.1} parent=1 // pred_region
      %s25 = ssub.s32 2048, 2048
      %26 = vsyncadd [#allocation6], %s25
      %s27 = sshll.u32 [#allocation5], 4
      %s28 = int_to_ptr.vmem [resolvable:$true] %s27
      %33 = dma.hbm_to_vmem [thread:$0]  %s1, 2048, %s28, [#allocation6], 64, 64, 4
    $region9: #{tpu_custom_call.1} parent=1 // pred_fallthru
      _
    // Predicated region
    $region10: #{tpu_custom_call.1} parent=1 // pred_check
      _
    $region11: #{tpu_custom_call.1} parent=1 // pred_check_branch
      %35 = sbr.rel (0) target = $region13
    $region12: #{tpu_custom_call.1} parent=1 // pred_region
      %36 = dma.done [#allocation3], 8192
    $region13: #{tpu_custom_call.1} parent=1 // pred_fallthru
      _
    // Predicated region
    $region14: #{tpu_custom_call.1} parent=1 // pred_check
      _
    $region15: #{tpu_custom_call.1} parent=1 // pred_check_branch
      %38 = sbr.rel (0) target = $region17
    $region16: #{tpu_custom_call.1} parent=1 // pred_region
      %39 = dma.done [#allocation6], 2048
    $region17: #{tpu_custom_call.1} parent=1 // pred_fallthru
      _
    %v41 = vld [vmem:[#allocation2] sm:$0xff]
    %v42 = vld [vmem:[#allocation2 + $0x8] sm:$0xff]
    %v43 = vld [vmem:[#allocation2 + $0x10] sm:$0xff]
    %v44 = vld [vmem:[#allocation2 + $0x18] sm:$0xff]
    %v45 = vld [vmem:[#allocation2 + $0x20] sm:$0xff]
    %v46 = vld [vmem:[#allocation2 + $0x28] sm:$0xff]
    %v47 = vld [vmem:[#allocation2 + $0x30] sm:$0xff]
    %v48 = vld [vmem:[#allocation2 + $0x38] sm:$0xff]
    %v49 = vld [vmem:[#allocation2 + $0x40] sm:$0xff]
    %v50 = vld [vmem:[#allocation2 + $0x48] sm:$0xff]
    %v51 = vld [vmem:[#allocation2 + $0x50] sm:$0xff]
    %v52 = vld [vmem:[#allocation2 + $0x58] sm:$0xff]
    %v53 = vld [vmem:[#allocation2 + $0x60] sm:$0xff]
    %v54 = vld [vmem:[#allocation2 + $0x68] sm:$0xff]
    %v55 = vld [vmem:[#allocation2 + $0x70] sm:$0xff]
    %v56 = vld [vmem:[#allocation2 + $0x78] sm:$0xff]
    %v57 = vld [vmem:[#allocation2 + $0x80] sm:$0xff]
    %v58 = vld [vmem:[#allocation2 + $0x88] sm:$0xff]
    %v59 = vld [vmem:[#allocation2 + $0x90] sm:$0xff]
    %v60 = vld [vmem:[#allocation2 + $0x98] sm:$0xff]
    %v61 = vld [vmem:[#allocation2 + $0xa0] sm:$0xff]
    %v62 = vld [vmem:[#allocation2 + $0xa8] sm:$0xff]
    %v63 = vld [vmem:[#allocation2 + $0xb0] sm:$0xff]
    %v64 = vld [vmem:[#allocation2 + $0xb8] sm:$0xff]
    %v65 = vld [vmem:[#allocation2 + $0xc0] sm:$0xff]
    %v66 = vld [vmem:[#allocation2 + $0xc8] sm:$0xff]
    %v67 = vld [vmem:[#allocation2 + $0xd0] sm:$0xff]
    %v68 = vld [vmem:[#allocation2 + $0xd8] sm:$0xff]
    %v69 = vld [vmem:[#allocation2 + $0xe0] sm:$0xff]
    %v70 = vld [vmem:[#allocation2 + $0xe8] sm:$0xff]
    %v71 = vld [vmem:[#allocation2 + $0xf0] sm:$0xff]
    %v72 = vld [vmem:[#allocation2 + $0xf8] sm:$0xff]
    %v73 = vld [vmem:[#allocation2 + $0x100] sm:$0xff]
    %v74 = vld [vmem:[#allocation2 + $0x108] sm:$0xff]
    %v75 = vld [vmem:[#allocation2 + $0x110] sm:$0xff]
    %v76 = vld [vmem:[#allocation2 + $0x118] sm:$0xff]
    %v77 = vld [vmem:[#allocation2 + $0x120] sm:$0xff]
    %v78 = vld [vmem:[#allocation2 + $0x128] sm:$0xff]
    %v79 = vld [vmem:[#allocation2 + $0x130] sm:$0xff]
    %v80 = vld [vmem:[#allocation2 + $0x138] sm:$0xff]
    %v81 = vld [vmem:[#allocation2 + $0x140] sm:$0xff]
    %v82 = vld [vmem:[#allocation2 + $0x148] sm:$0xff]
    %v83 = vld [vmem:[#allocation2 + $0x150] sm:$0xff]
    %v84 = vld [vmem:[#allocation2 + $0x158] sm:$0xff]
    %v85 = vld [vmem:[#allocation2 + $0x160] sm:$0xff]
    %v86 = vld [vmem:[#allocation2 + $0x168] sm:$0xff]
    %v87 = vld [vmem:[#allocation2 + $0x170] sm:$0xff]
    %v88 = vld [vmem:[#allocation2 + $0x178] sm:$0xff]
    %v89 = vld [vmem:[#allocation2 + $0x180] sm:$0xff]
    %v90 = vld [vmem:[#allocation2 + $0x188] sm:$0xff]
    %v91 = vld [vmem:[#allocation2 + $0x190] sm:$0xff]
    %v92 = vld [vmem:[#allocation2 + $0x198] sm:$0xff]
    %v93 = vld [vmem:[#allocation2 + $0x1a0] sm:$0xff]
    %v94 = vld [vmem:[#allocation2 + $0x1a8] sm:$0xff]
    %v95 = vld [vmem:[#allocation2 + $0x1b0] sm:$0xff]
    %v96 = vld [vmem:[#allocation2 + $0x1b8] sm:$0xff]
    %v97 = vld [vmem:[#allocation2 + $0x1c0] sm:$0xff]
    %v98 = vld [vmem:[#allocation2 + $0x1c8] sm:$0xff]
    %v99 = vld [vmem:[#allocation2 + $0x1d0] sm:$0xff]
    %v100 = vld [vmem:[#allocation2 + $0x1d8] sm:$0xff]
    %v101 = vld [vmem:[#allocation2 + $0x1e0] sm:$0xff]
    %v102 = vld [vmem:[#allocation2 + $0x1e8] sm:$0xff]
    %v103 = vld [vmem:[#allocation2 + $0x1f0] sm:$0xff]
    %v104 = vld [vmem:[#allocation2 + $0x1f8] sm:$0xff]
    %v105 = vld [vmem:[#allocation5] sm:$0xf]
    %v106 = vld [vmem:[#allocation5 + $0x4] sm:$0xf]
    %v107 = vld [vmem:[#allocation5 + $0x8] sm:$0xf]
    %v108 = vld [vmem:[#allocation5 + $0xc] sm:$0xf]
    %v109 = vld [vmem:[#allocation5 + $0x10] sm:$0xf]
    %v110 = vld [vmem:[#allocation5 + $0x14] sm:$0xf]
    %v111 = vld [vmem:[#allocation5 + $0x18] sm:$0xf]
    %v112 = vld [vmem:[#allocation5 + $0x1c] sm:$0xf]
    %v113 = vld [vmem:[#allocation5 + $0x20] sm:$0xf]
    %v114 = vld [vmem:[#allocation5 + $0x24] sm:$0xf]
    %v115 = vld [vmem:[#allocation5 + $0x28] sm:$0xf]
    %v116 = vld [vmem:[#allocation5 + $0x2c] sm:$0xf]
    %v117 = vld [vmem:[#allocation5 + $0x30] sm:$0xf]
    %v118 = vld [vmem:[#allocation5 + $0x34] sm:$0xf]
    %v119 = vld [vmem:[#allocation5 + $0x38] sm:$0xf]
    %v120 = vld [vmem:[#allocation5 + $0x3c] sm:$0xf]
    %v121 = vld [vmem:[#allocation5 + $0x40] sm:$0xf]
    %v122 = vld [vmem:[#allocation5 + $0x44] sm:$0xf]
    %v123 = vld [vmem:[#allocation5 + $0x48] sm:$0xf]
    %v124 = vld [vmem:[#allocation5 + $0x4c] sm:$0xf]
    %v125 = vld [vmem:[#allocation5 + $0x50] sm:$0xf]
    %v126 = vld [vmem:[#allocation5 + $0x54] sm:$0xf]
    %v127 = vld [vmem:[#allocation5 + $0x58] sm:$0xf]
    %v128 = vld [vmem:[#allocation5 + $0x5c] sm:$0xf]
    %v129 = vld [vmem:[#allocation5 + $0x60] sm:$0xf]
    %v130 = vld [vmem:[#allocation5 + $0x64] sm:$0xf]
    %v131 = vld [vmem:[#allocation5 + $0x68] sm:$0xf]
    %v132 = vld [vmem:[#allocation5 + $0x6c] sm:$0xf]
    %v133 = vld [vmem:[#allocation5 + $0x70] sm:$0xf]
    %v134 = vld [vmem:[#allocation5 + $0x74] sm:$0xf]
    %v135 = vld [vmem:[#allocation5 + $0x78] sm:$0xf]
    %v136 = vld [vmem:[#allocation5 + $0x7c] sm:$0xf]
    %v201 = vunpack.c.l.b16 %v41
    %v202 = vunpack.c.h.b16 %v41
    %v203 = vunpack.c.l.b16 %v42
    %v204 = vunpack.c.h.b16 %v42
    %v205 = vunpack.c.l.b16 %v43
    %v206 = vunpack.c.h.b16 %v43
    %v207 = vunpack.c.l.b16 %v44
    %v208 = vunpack.c.h.b16 %v44
    %v209 = vunpack.c.l.b16 %v45
    %v210 = vunpack.c.h.b16 %v45
    %v211 = vunpack.c.l.b16 %v46
    %v212 = vunpack.c.h.b16 %v46
    %v213 = vunpack.c.l.b16 %v47
    %v214 = vunpack.c.h.b16 %v47
    %v215 = vunpack.c.l.b16 %v48
    %v216 = vunpack.c.h.b16 %v48
    %v217 = vunpack.c.l.b16 %v49
    %v218 = vunpack.c.h.b16 %v49
    %v219 = vunpack.c.l.b16 %v50
    %v220 = vunpack.c.h.b16 %v50
    %v221 = vunpack.c.l.b16 %v51
    %v222 = vunpack.c.h.b16 %v51
    %v223 = vunpack.c.l.b16 %v52
    %v224 = vunpack.c.h.b16 %v52
    %v225 = vunpack.c.l.b16 %v53
    %v226 = vunpack.c.h.b16 %v53
    %v227 = vunpack.c.l.b16 %v54
    %v228 = vunpack.c.h.b16 %v54
    %v229 = vunpack.c.l.b16 %v55
    %v230 = vunpack.c.h.b16 %v55
    %v231 = vunpack.c.l.b16 %v56
    %v232 = vunpack.c.h.b16 %v56
    %v233 = vunpack.c.l.b16 %v57
    %v234 = vunpack.c.h.b16 %v57
    %v235 = vunpack.c.l.b16 %v58
    %v236 = vunpack.c.h.b16 %v58
    %v237 = vunpack.c.l.b16 %v59
    %v238 = vunpack.c.h.b16 %v59
    %v239 = vunpack.c.l.b16 %v60
    %v240 = vunpack.c.h.b16 %v60
    %v241 = vunpack.c.l.b16 %v61
    %v242 = vunpack.c.h.b16 %v61
    %v243 = vunpack.c.l.b16 %v62
    %v244 = vunpack.c.h.b16 %v62
    %v245 = vunpack.c.l.b16 %v63
    %v246 = vunpack.c.h.b16 %v63
    %v247 = vunpack.c.l.b16 %v64
    %v248 = vunpack.c.h.b16 %v64
    %v249 = vunpack.c.l.b16 %v65
    %v250 = vunpack.c.h.b16 %v65
    %v251 = vunpack.c.l.b16 %v66
    %v252 = vunpack.c.h.b16 %v66
    %v253 = vunpack.c.l.b16 %v67
    %v254 = vunpack.c.h.b16 %v67
    %v255 = vunpack.c.l.b16 %v68
    %v256 = vunpack.c.h.b16 %v68
    %v257 = vunpack.c.l.b16 %v69
    %v258 = vunpack.c.h.b16 %v69
    %v259 = vunpack.c.l.b16 %v70
    %v260 = vunpack.c.h.b16 %v70
    %v261 = vunpack.c.l.b16 %v71
    %v262 = vunpack.c.h.b16 %v71
    %v263 = vunpack.c.l.b16 %v72
    %v264 = vunpack.c.h.b16 %v72
    %v265 = vunpack.c.l.b16 %v73
    %v266 = vunpack.c.h.b16 %v73
    %v267 = vunpack.c.l.b16 %v74
    %v268 = vunpack.c.h.b16 %v74
    %v269 = vunpack.c.l.b16 %v75
    %v270 = vunpack.c.h.b16 %v75
    %v271 = vunpack.c.l.b16 %v76
    %v272 = vunpack.c.h.b16 %v76
    %v273 = vunpack.c.l.b16 %v77
    %v274 = vunpack.c.h.b16 %v77
    %v275 = vunpack.c.l.b16 %v78
    %v276 = vunpack.c.h.b16 %v78
    %v277 = vunpack.c.l.b16 %v79
    %v278 = vunpack.c.h.b16 %v79
    %v279 = vunpack.c.l.b16 %v80
    %v280 = vunpack.c.h.b16 %v80
    %v281 = vunpack.c.l.b16 %v81
    %v282 = vunpack.c.h.b16 %v81
    %v283 = vunpack.c.l.b16 %v82
    %v284 = vunpack.c.h.b16 %v82
    %v285 = vunpack.c.l.b16 %v83
    %v286 = vunpack.c.h.b16 %v83
    %v287 = vunpack.c.l.b16 %v84
    %v288 = vunpack.c.h.b16 %v84
    %v289 = vunpack.c.l.b16 %v85
    %v290 = vunpack.c.h.b16 %v85
    %v291 = vunpack.c.l.b16 %v86
    %v292 = vunpack.c.h.b16 %v86
    %v293 = vunpack.c.l.b16 %v87
    %v294 = vunpack.c.h.b16 %v87
    %v295 = vunpack.c.l.b16 %v88
    %v296 = vunpack.c.h.b16 %v88
    %v297 = vunpack.c.l.b16 %v89
    %v298 = vunpack.c.h.b16 %v89
    %v299 = vunpack.c.l.b16 %v90
    %v300 = vunpack.c.h.b16 %v90
    %v301 = vunpack.c.l.b16 %v91
    %v302 = vunpack.c.h.b16 %v91
    %v303 = vunpack.c.l.b16 %v92
    %v304 = vunpack.c.h.b16 %v92
    %v305 = vunpack.c.l.b16 %v93
    %v306 = vunpack.c.h.b16 %v93
    %v307 = vunpack.c.l.b16 %v94
    %v308 = vunpack.c.h.b16 %v94
    %v309 = vunpack.c.l.b16 %v95
    %v310 = vunpack.c.h.b16 %v95
    %v311 = vunpack.c.l.b16 %v96
    %v312 = vunpack.c.h.b16 %v96
    %v313 = vunpack.c.l.b16 %v97
    %v314 = vunpack.c.h.b16 %v97
    %v315 = vunpack.c.l.b16 %v98
    %v316 = vunpack.c.h.b16 %v98
    %v317 = vunpack.c.l.b16 %v99
    %v318 = vunpack.c.h.b16 %v99
    %v319 = vunpack.c.l.b16 %v100
    %v320 = vunpack.c.h.b16 %v100
    %v321 = vunpack.c.l.b16 %v101
    %v322 = vunpack.c.h.b16 %v101
    %v323 = vunpack.c.l.b16 %v102
    %v324 = vunpack.c.h.b16 %v102
    %v325 = vunpack.c.l.b16 %v103
    %v326 = vunpack.c.h.b16 %v103
    %v327 = vunpack.c.l.b16 %v104
    %v328 = vunpack.c.h.b16 %v104
    %v329 = vpack.c.b16 %v203, %v201
    %v330 = vpack.c.b16 %v204, %v202
    %v331 = vpack.c.b16 %v207, %v205
    %v332 = vpack.c.b16 %v208, %v206
    %v333 = vpack.c.b16 %v211, %v209
    %v334 = vpack.c.b16 %v212, %v210
    %v335 = vpack.c.b16 %v215, %v213
    %v336 = vpack.c.b16 %v216, %v214
    %v337 = vpack.c.b16 %v219, %v217
    %v338 = vpack.c.b16 %v220, %v218
    %v339 = vpack.c.b16 %v223, %v221
    %v340 = vpack.c.b16 %v224, %v222
    %v341 = vpack.c.b16 %v227, %v225
    %v342 = vpack.c.b16 %v228, %v226
    %v343 = vpack.c.b16 %v231, %v229
    %v344 = vpack.c.b16 %v232, %v230
    %v345 = vpack.c.b16 %v235, %v233
    %v346 = vpack.c.b16 %v236, %v234
    %v347 = vpack.c.b16 %v239, %v237
    %v348 = vpack.c.b16 %v240, %v238
    %v349 = vpack.c.b16 %v243, %v241
    %v350 = vpack.c.b16 %v244, %v242
    %v351 = vpack.c.b16 %v247, %v245
    %v352 = vpack.c.b16 %v248, %v246
    %v353 = vpack.c.b16 %v251, %v249
    %v354 = vpack.c.b16 %v252, %v250
    %v355 = vpack.c.b16 %v255, %v253
    %v356 = vpack.c.b16 %v256, %v254
    %v357 = vpack.c.b16 %v259, %v257
    %v358 = vpack.c.b16 %v260, %v258
    %v359 = vpack.c.b16 %v263, %v261
    %v360 = vpack.c.b16 %v264, %v262
    %v361 = vpack.c.b16 %v267, %v265
    %v362 = vpack.c.b16 %v268, %v266
    %v363 = vpack.c.b16 %v271, %v269
    %v364 = vpack.c.b16 %v272, %v270
    %v365 = vpack.c.b16 %v275, %v273
    %v366 = vpack.c.b16 %v276, %v274
    %v367 = vpack.c.b16 %v279, %v277
    %v368 = vpack.c.b16 %v280, %v278
    %v369 = vpack.c.b16 %v283, %v281
    %v370 = vpack.c.b16 %v284, %v282
    %v371 = vpack.c.b16 %v287, %v285
    %v372 = vpack.c.b16 %v288, %v286
    %v373 = vpack.c.b16 %v291, %v289
    %v374 = vpack.c.b16 %v292, %v290
    %v375 = vpack.c.b16 %v295, %v293
    %v376 = vpack.c.b16 %v296, %v294
    %v377 = vpack.c.b16 %v299, %v297
    %v378 = vpack.c.b16 %v300, %v298
    %v379 = vpack.c.b16 %v303, %v301
    %v380 = vpack.c.b16 %v304, %v302
    %v381 = vpack.c.b16 %v307, %v305
    %v382 = vpack.c.b16 %v308, %v306
    %v383 = vpack.c.b16 %v311, %v309
    %v384 = vpack.c.b16 %v312, %v310
    %v385 = vpack.c.b16 %v315, %v313
    %v386 = vpack.c.b16 %v316, %v314
    %v387 = vpack.c.b16 %v319, %v317
    %v388 = vpack.c.b16 %v320, %v318
    %v389 = vpack.c.b16 %v323, %v321
    %v390 = vpack.c.b16 %v324, %v322
    %v391 = vpack.c.b16 %v327, %v325
    %v392 = vpack.c.b16 %v328, %v326
    %v489 = vunpack.c.l.b16 %v105
    %v490 = vunpack.c.l.b16 %v106
    %v491 = vunpack.c.l.b16 %v107
    %v492 = vunpack.c.l.b16 %v108
    %v493 = vunpack.c.l.b16 %v109
    %v494 = vunpack.c.l.b16 %v110
    %v495 = vunpack.c.l.b16 %v111
    %v496 = vunpack.c.l.b16 %v112
    %v497 = vunpack.c.l.b16 %v113
    %v498 = vunpack.c.l.b16 %v114
    %v499 = vunpack.c.l.b16 %v115
    %v500 = vunpack.c.l.b16 %v116
    %v501 = vunpack.c.l.b16 %v117
    %v502 = vunpack.c.l.b16 %v118
    %v503 = vunpack.c.l.b16 %v119
    %v504 = vunpack.c.l.b16 %v120
    %v505 = vunpack.c.l.b16 %v121
    %v506 = vunpack.c.l.b16 %v122
    %v507 = vunpack.c.l.b16 %v123
    %v508 = vunpack.c.l.b16 %v124
    %v509 = vunpack.c.l.b16 %v125
    %v510 = vunpack.c.l.b16 %v126
    %v511 = vunpack.c.l.b16 %v127
    %v512 = vunpack.c.l.b16 %v128
    %v513 = vunpack.c.l.b16 %v129
    %v514 = vunpack.c.l.b16 %v130
    %v515 = vunpack.c.l.b16 %v131
    %v516 = vunpack.c.l.b16 %v132
    %v517 = vunpack.c.l.b16 %v133
    %v518 = vunpack.c.l.b16 %v134
    %v519 = vunpack.c.l.b16 %v135
    %v520 = vunpack.c.l.b16 %v136
    %v521 = vpack.c.b16 %v490, %v489
    %v522 = vpack.c.b16 %v492, %v491
    %v523 = vpack.c.b16 %v494, %v493
    %v524 = vpack.c.b16 %v496, %v495
    %v525 = vpack.c.b16 %v498, %v497
    %v526 = vpack.c.b16 %v500, %v499
    %v527 = vpack.c.b16 %v502, %v501
    %v528 = vpack.c.b16 %v504, %v503
    %v529 = vpack.c.b16 %v506, %v505
    %v530 = vpack.c.b16 %v508, %v507
    %v531 = vpack.c.b16 %v510, %v509
    %v532 = vpack.c.b16 %v512, %v511
    %v533 = vpack.c.b16 %v514, %v513
    %v534 = vpack.c.b16 %v516, %v515
    %v535 = vpack.c.b16 %v518, %v517
    %v536 = vpack.c.b16 %v520, %v519
    %553 = vmatprep.subr.bf16.mxu0 0
    %554 = vmatpush1.bf16.msra.mxu0 %v521
    %555 = vmatprep.subr.bf16.mxu0 0
    %556 = vmatpush1.bf16.msra.mxu0 %v522
    %557 = vmatprep.subr.bf16.mxu0 0
    %558 = vmatpush1.bf16.msra.mxu0 %v523
    %559 = vmatprep.subr.bf16.mxu0 0
    %560 = vmatpush1.bf16.msra.mxu0 %v524
    %561 = vmatprep.subr.bf16.mxu0 0
    %562 = vmatpush1.bf16.msra.mxu0 %v525
    %563 = vmatprep.subr.bf16.mxu0 0
    %564 = vmatpush1.bf16.msra.mxu0 %v526
    %565 = vmatprep.subr.bf16.mxu0 0
    %566 = vmatpush1.bf16.msra.mxu0 %v527
    %567 = vmatprep.subr.bf16.mxu0 0
    %568 = vmatpush1.bf16.msra.mxu0 %v528
    %569 = vmatprep.subr.bf16.mxu0 0
    %570 = vmatpush1.bf16.msra.mxu0 %v529
    %571 = vmatprep.subr.bf16.mxu0 0
    %572 = vmatpush1.bf16.msra.mxu0 %v530
    %573 = vmatprep.subr.bf16.mxu0 0
    %574 = vmatpush1.bf16.msra.mxu0 %v531
    %575 = vmatprep.subr.bf16.mxu0 0
    %576 = vmatpush1.bf16.msra.mxu0 %v532
    %577 = vmatprep.subr.bf16.mxu0 0
    %578 = vmatpush1.bf16.msra.mxu0 %v533
    %579 = vmatprep.subr.bf16.mxu0 0
    %580 = vmatpush1.bf16.msra.mxu0 %v534
    %581 = vmatprep.subr.bf16.mxu0 0
    %582 = vmatpush1.bf16.msra.mxu0 %v535
    %583 = vmatprep.subr.bf16.mxu0 0
    %584 = vmatpush1.bf16.msra.mxu0 %v536
    %585 = vmatprep.mubr.bf16.mxu0 %v330
    %586 = vmatmul.mubr.bf16.gmra.mrb[0].mxu0 %v329
    %v587 = vpop.f32.mrb[0].mxu0
    %v588 = vadd.f32 0.0, %v587
    %v589 = vpop.f32.mrb[0].mxu0
    %v590 = vpop.f32.mrb[0].mxu0
    %v591 = vadd.f32 0.0, %v590
    %v592 = vpop.f32.mrb[0].mxu0
    %593 = vmatprep.mubr.bf16.mxu0 %v332
    %594 = vmatmul.mubr.bf16.gmra.mrb[0].mxu0 %v331
    %v595 = vpop.f32.mrb[0].mxu0
    %v596 = vadd.f32 0.0, %v595
    %v597 = vpop.f32.mrb[0].mxu0
    %v598 = vpop.f32.mrb[0].mxu0
    %v599 = vadd.f32 0.0, %v598
    %v600 = vpop.f32.mrb[0].mxu0
    %601 = vmatprep.mubr.bf16.mxu0 %v334
    %602 = vmatmul.mubr.bf16.gmra.mrb[0].mxu0 %v333
    %v603 = vpop.f32.mrb[0].mxu0
    %v604 = vadd.f32 0.0, %v603
    %v605 = vpop.f32.mrb[0].mxu0
    %v606 = vpop.f32.mrb[0].mxu0
    %v607 = vadd.f32 0.0, %v606
    %v608 = vpop.f32.mrb[0].mxu0
    %609 = vmatprep.mubr.bf16.mxu0 %v336
    %610 = vmatmul.mubr.bf16.gmra.mrb[0].mxu0 %v335
    %v611 = vpop.f32.mrb[0].mxu0
    %v612 = vadd.f32 0.0, %v611
    %v613 = vpop.f32.mrb[0].mxu0
    %v614 = vpop.f32.mrb[0].mxu0
    %v615 = vadd.f32 0.0, %v614
    %v616 = vpop.f32.mrb[0].mxu0
    %617 = vmatprep.mubr.bf16.mxu0 %v338
    %618 = vmatmul.mubr.bf16.gmra.mrb[0].mxu0 %v337
    %v619 = vpop.f32.mrb[0].mxu0
    %v620 = vadd.f32 0.0, %v619
    %v621 = vpop.f32.mrb[0].mxu0
    %v622 = vpop.f32.mrb[0].mxu0
    %v623 = vadd.f32 0.0, %v622
    %v624 = vpop.f32.mrb[0].mxu0
    %625 = vmatprep.mubr.bf16.mxu0 %v340
    %626 = vmatmul.mubr.bf16.gmra.mrb[0].mxu0 %v339
    %v627 = vpop.f32.mrb[0].mxu0
    %v628 = vadd.f32 0.0, %v627
    %v629 = vpop.f32.mrb[0].mxu0
    %v630 = vpop.f32.mrb[0].mxu0
    %v631 = vadd.f32 0.0, %v630
    %v632 = vpop.f32.mrb[0].mxu0
    %633 = vmatprep.mubr.bf16.mxu0 %v342
    %634 = vmatmul.mubr.bf16.gmra.mrb[0].mxu0 %v341
    %v635 = vpop.f32.mrb[0].mxu0
    %v636 = vadd.f32 0.0, %v635
    %v637 = vpop.f32.mrb[0].mxu0
    %v638 = vpop.f32.mrb[0].mxu0
    %v639 = vadd.f32 0.0, %v638
    %v640 = vpop.f32.mrb[0].mxu0
    %641 = vmatprep.mubr.bf16.mxu0 %v344
    %642 = vmatmul.mubr.bf16.gmra.mrb[0].mxu0 %v343
    %v643 = vpop.f32.mrb[0].mxu0
    %v644 = vadd.f32 0.0, %v643
    %v645 = vpop.f32.mrb[0].mxu0
    %v646 = vpop.f32.mrb[0].mxu0
    %v647 = vadd.f32 0.0, %v646
    %v648 = vpop.f32.mrb[0].mxu0
    %649 = vmatprep.mubr.bf16.mxu0 %v346
    %650 = vmatmul.mubr.bf16.gmra.mrb[0].mxu0 %v345
    %v651 = vpop.f32.mrb[0].mxu0
    %v652 = vadd.f32 0.0, %v651
    %v653 = vpop.f32.mrb[0].mxu0
    %v654 = vpop.f32.mrb[0].mxu0
    %v655 = vadd.f32 0.0, %v654
    %v656 = vpop.f32.mrb[0].mxu0
    %657 = vmatprep.mubr.bf16.mxu0 %v348
    %658 = vmatmul.mubr.bf16.gmra.mrb[0].mxu0 %v347
    %v659 = vpop.f32.mrb[0].mxu0
    %v660 = vadd.f32 0.0, %v659
    %v661 = vpop.f32.mrb[0].mxu0
    %v662 = vpop.f32.mrb[0].mxu0
    %v663 = vadd.f32 0.0, %v662
    %v664 = vpop.f32.mrb[0].mxu0
    %665 = vmatprep.mubr.bf16.mxu0 %v350
    %666 = vmatmul.mubr.bf16.gmra.mrb[0].mxu0 %v349
    %v667 = vpop.f32.mrb[0].mxu0
    %v668 = vadd.f32 0.0, %v667
    %v669 = vpop.f32.mrb[0].mxu0
    %v670 = vpop.f32.mrb[0].mxu0
    %v671 = vadd.f32 0.0, %v670
    %v672 = vpop.f32.mrb[0].mxu0
    %673 = vmatprep.mubr.bf16.mxu0 %v352
    %674 = vmatmul.mubr.bf16.gmra.mrb[0].mxu0 %v351
    %v675 = vpop.f32.mrb[0].mxu0
    %v676 = vadd.f32 0.0, %v675
    %v677 = vpop.f32.mrb[0].mxu0
    %v678 = vpop.f32.mrb[0].mxu0
    %v679 = vadd.f32 0.0, %v678
    %v680 = vpop.f32.mrb[0].mxu0
    %681 = vmatprep.mubr.bf16.mxu0 %v354
    %682 = vmatmul.mubr.bf16.gmra.mrb[0].mxu0 %v353
    %v683 = vpop.f32.mrb[0].mxu0
    %v684 = vadd.f32 0.0, %v683
    %v685 = vpop.f32.mrb[0].mxu0
    %v686 = vpop.f32.mrb[0].mxu0
    %v687 = vadd.f32 0.0, %v686
    %v688 = vpop.f32.mrb[0].mxu0
    %689 = vmatprep.mubr.bf16.mxu0 %v356
    %690 = vmatmul.mubr.bf16.gmra.mrb[0].mxu0 %v355
    %v691 = vpop.f32.mrb[0].mxu0
    %v692 = vadd.f32 0.0, %v691
    %v693 = vpop.f32.mrb[0].mxu0
    %v694 = vpop.f32.mrb[0].mxu0
    %v695 = vadd.f32 0.0, %v694
    %v696 = vpop.f32.mrb[0].mxu0
    %697 = vmatprep.mubr.bf16.mxu0 %v358
    %698 = vmatmul.mubr.bf16.gmra.mrb[0].mxu0 %v357
    %v699 = vpop.f32.mrb[0].mxu0
    %v700 = vadd.f32 0.0, %v699
    %v701 = vpop.f32.mrb[0].mxu0
    %v702 = vpop.f32.mrb[0].mxu0
    %v703 = vadd.f32 0.0, %v702
    %v704 = vpop.f32.mrb[0].mxu0
    %705 = vmatprep.mubr.bf16.mxu0 %v360
    %706 = vmatmul.mubr.bf16.gmra.mrb[0].mxu0 %v359
    %v707 = vpop.f32.mrb[0].mxu0
    %v708 = vadd.f32 0.0, %v707
    %v709 = vpop.f32.mrb[0].mxu0
    %v710 = vpop.f32.mrb[0].mxu0
    %v711 = vadd.f32 0.0, %v710
    %v712 = vpop.f32.mrb[0].mxu0
    %713 = vmatprep.mubr.bf16.mxu0 %v362
    %714 = vmatmul.mubr.bf16.gmra.mrb[0].mxu0 %v361
    %v715 = vpop.f32.mrb[0].mxu0
    %v716 = vadd.f32 0.0, %v715
    %v717 = vpop.f32.mrb[0].mxu0
    %v718 = vpop.f32.mrb[0].mxu0
    %v719 = vadd.f32 0.0, %v718
    %v720 = vpop.f32.mrb[0].mxu0
    %721 = vmatprep.mubr.bf16.mxu0 %v364
    %722 = vmatmul.mubr.bf16.gmra.mrb[0].mxu0 %v363
    %v723 = vpop.f32.mrb[0].mxu0
    %v724 = vadd.f32 0.0, %v723
    %v725 = vpop.f32.mrb[0].mxu0
    %v726 = vpop.f32.mrb[0].mxu0
    %v727 = vadd.f32 0.0, %v726
    %v728 = vpop.f32.mrb[0].mxu0
    %729 = vmatprep.mubr.bf16.mxu0 %v366
    %730 = vmatmul.mubr.bf16.gmra.mrb[0].mxu0 %v365
    %v731 = vpop.f32.mrb[0].mxu0
    %v732 = vadd.f32 0.0, %v731
    %v733 = vpop.f32.mrb[0].mxu0
    %v734 = vpop.f32.mrb[0].mxu0
    %v735 = vadd.f32 0.0, %v734
    %v736 = vpop.f32.mrb[0].mxu0
    %737 = vmatprep.mubr.bf16.mxu0 %v368
    %738 = vmatmul.mubr.bf16.gmra.mrb[0].mxu0 %v367
    %v739 = vpop.f32.mrb[0].mxu0
    %v740 = vadd.f32 0.0, %v739
    %v741 = vpop.f32.mrb[0].mxu0
    %v742 = vpop.f32.mrb[0].mxu0
    %v743 = vadd.f32 0.0, %v742
    %v744 = vpop.f32.mrb[0].mxu0
    %745 = vmatprep.mubr.bf16.mxu0 %v370
    %746 = vmatmul.mubr.bf16.gmra.mrb[0].mxu0 %v369
    %v747 = vpop.f32.mrb[0].mxu0
    %v748 = vadd.f32 0.0, %v747
    %v749 = vpop.f32.mrb[0].mxu0
    %v750 = vpop.f32.mrb[0].mxu0
    %v751 = vadd.f32 0.0, %v750
    %v752 = vpop.f32.mrb[0].mxu0
    %753 = vmatprep.mubr.bf16.mxu0 %v372
    %754 = vmatmul.mubr.bf16.gmra.mrb[0].mxu0 %v371
    %v755 = vpop.f32.mrb[0].mxu0
    %v756 = vadd.f32 0.0, %v755
    %v757 = vpop.f32.mrb[0].mxu0
    %v758 = vpop.f32.mrb[0].mxu0
    %v759 = vadd.f32 0.0, %v758
    %v760 = vpop.f32.mrb[0].mxu0
    %761 = vmatprep.mubr.bf16.mxu0 %v374
    %762 = vmatmul.mubr.bf16.gmra.mrb[0].mxu0 %v373
    %v763 = vpop.f32.mrb[0].mxu0
    %v764 = vadd.f32 0.0, %v763
    %v765 = vpop.f32.mrb[0].mxu0
    %v766 = vpop.f32.mrb[0].mxu0
    %v767 = vadd.f32 0.0, %v766
    %v768 = vpop.f32.mrb[0].mxu0
    %769 = vmatprep.mubr.bf16.mxu0 %v376
    %770 = vmatmul.mubr.bf16.gmra.mrb[0].mxu0 %v375
    %v771 = vpop.f32.mrb[0].mxu0
    %v772 = vadd.f32 0.0, %v771
    %v773 = vpop.f32.mrb[0].mxu0
    %v774 = vpop.f32.mrb[0].mxu0
    %v775 = vadd.f32 0.0, %v774
    %v776 = vpop.f32.mrb[0].mxu0
    %777 = vmatprep.mubr.bf16.mxu0 %v378
    %778 = vmatmul.mubr.bf16.gmra.mrb[0].mxu0 %v377
    %v779 = vpop.f32.mrb[0].mxu0
    %v780 = vadd.f32 0.0, %v779
    %v781 = vpop.f32.mrb[0].mxu0
    %v782 = vpop.f32.mrb[0].mxu0
    %v783 = vadd.f32 0.0, %v782
    %v784 = vpop.f32.mrb[0].mxu0
    %785 = vmatprep.mubr.bf16.mxu0 %v380
    %786 = vmatmul.mubr.bf16.gmra.mrb[0].mxu0 %v379
    %v787 = vpop.f32.mrb[0].mxu0
    %v788 = vadd.f32 0.0, %v787
    %v789 = vpop.f32.mrb[0].mxu0
    %v790 = vpop.f32.mrb[0].mxu0
    %v791 = vadd.f32 0.0, %v790
    %v792 = vpop.f32.mrb[0].mxu0
    %793 = vmatprep.mubr.bf16.mxu0 %v382
    %794 = vmatmul.mubr.bf16.gmra.mrb[0].mxu0 %v381
    %v795 = vpop.f32.mrb[0].mxu0
    %v796 = vadd.f32 0.0, %v795
    %v797 = vpop.f32.mrb[0].mxu0
    %v798 = vpop.f32.mrb[0].mxu0
    %v799 = vadd.f32 0.0, %v798
    %v800 = vpop.f32.mrb[0].mxu0
    %801 = vmatprep.mubr.bf16.mxu0 %v384
    %802 = vmatmul.mubr.bf16.gmra.mrb[0].mxu0 %v383
    %v803 = vpop.f32.mrb[0].mxu0
    %v804 = vadd.f32 0.0, %v803
    %v805 = vpop.f32.mrb[0].mxu0
    %v806 = vpop.f32.mrb[0].mxu0
    %v807 = vadd.f32 0.0, %v806
    %v808 = vpop.f32.mrb[0].mxu0
    %809 = vmatprep.mubr.bf16.mxu0 %v386
    %810 = vmatmul.mubr.bf16.gmra.mrb[0].mxu0 %v385
    %v811 = vpop.f32.mrb[0].mxu0
    %v812 = vadd.f32 0.0, %v811
    %v813 = vpop.f32.mrb[0].mxu0
    %v814 = vpop.f32.mrb[0].mxu0
    %v815 = vadd.f32 0.0, %v814
    %v816 = vpop.f32.mrb[0].mxu0
    %817 = vmatprep.mubr.bf16.mxu0 %v388
    %818 = vmatmul.mubr.bf16.gmra.mrb[0].mxu0 %v387
    %v819 = vpop.f32.mrb[0].mxu0
    %v820 = vadd.f32 0.0, %v819
    %v821 = vpop.f32.mrb[0].mxu0
    %v822 = vpop.f32.mrb[0].mxu0
    %v823 = vadd.f32 0.0, %v822
    %v824 = vpop.f32.mrb[0].mxu0
    %825 = vmatprep.mubr.bf16.mxu0 %v390
    %826 = vmatmul.mubr.bf16.gmra.mrb[0].mxu0 %v389
    %v827 = vpop.f32.mrb[0].mxu0
    %v828 = vadd.f32 0.0, %v827
    %v829 = vpop.f32.mrb[0].mxu0
    %v830 = vpop.f32.mrb[0].mxu0
    %v831 = vadd.f32 0.0, %v830
    %v832 = vpop.f32.mrb[0].mxu0
    %833 = vmatprep.mubr.bf16.mxu0 %v392
    %834 = vmatmul.mubr.bf16.gmra.mrb[0].mxu0 %v391
    %v835 = vpop.f32.mrb[0].mxu0
    %v836 = vadd.f32 0.0, %v835
    %v837 = vpop.f32.mrb[0].mxu0
    %v838 = vpop.f32.mrb[0].mxu0
    %v839 = vadd.f32 0.0, %v838
    %v840 = vpop.f32.mrb[0].mxu0
    %841 = vdwg.mxu0
    %842 = vst [vmem:[#allocation7] sm:$0xff] %v588
    %843 = vst [vmem:[#allocation7 + $0x8] sm:$0xff] %v591
    %844 = vst [vmem:[#allocation7 + $0x10] sm:$0xff] %v596
    %845 = vst [vmem:[#allocation7 + $0x18] sm:$0xff] %v599
    %846 = vst [vmem:[#allocation7 + $0x20] sm:$0xff] %v604
    %847 = vst [vmem:[#allocation7 + $0x28] sm:$0xff] %v607
    %848 = vst [vmem:[#allocation7 + $0x30] sm:$0xff] %v612
    %849 = vst [vmem:[#allocation7 + $0x38] sm:$0xff] %v615
    %850 = vst [vmem:[#allocation7 + $0x40] sm:$0xff] %v620
    %851 = vst [vmem:[#allocation7 + $0x48] sm:$0xff] %v623
    %852 = vst [vmem:[#allocation7 + $0x50] sm:$0xff] %v628
    %853 = vst [vmem:[#allocation7 + $0x58] sm:$0xff] %v631
    %854 = vst [vmem:[#allocation7 + $0x60] sm:$0xff] %v636
    %855 = vst [vmem:[#allocation7 + $0x68] sm:$0xff] %v639
    %856 = vst [vmem:[#allocation7 + $0x70] sm:$0xff] %v644
    %857 = vst [vmem:[#allocation7 + $0x78] sm:$0xff] %v647
    %858 = vst [vmem:[#allocation7 + $0x80] sm:$0xff] %v652
    %859 = vst [vmem:[#allocation7 + $0x88] sm:$0xff] %v655
    %860 = vst [vmem:[#allocation7 + $0x90] sm:$0xff] %v660
    %861 = vst [vmem:[#allocation7 + $0x98] sm:$0xff] %v663
    %862 = vst [vmem:[#allocation7 + $0xa0] sm:$0xff] %v668
    %863 = vst [vmem:[#allocation7 + $0xa8] sm:$0xff] %v671
    %864 = vst [vmem:[#allocation7 + $0xb0] sm:$0xff] %v676
    %865 = vst [vmem:[#allocation7 + $0xb8] sm:$0xff] %v679
    %866 = vst [vmem:[#allocation7 + $0xc0] sm:$0xff] %v684
    %867 = vst [vmem:[#allocation7 + $0xc8] sm:$0xff] %v687
    %868 = vst [vmem:[#allocation7 + $0xd0] sm:$0xff] %v692
    %869 = vst [vmem:[#allocation7 + $0xd8] sm:$0xff] %v695
    %870 = vst [vmem:[#allocation7 + $0xe0] sm:$0xff] %v700
    %871 = vst [vmem:[#allocation7 + $0xe8] sm:$0xff] %v703
    %872 = vst [vmem:[#allocation7 + $0xf0] sm:$0xff] %v708
    %873 = vst [vmem:[#allocation7 + $0xf8] sm:$0xff] %v711
    %874 = vst [vmem:[#allocation7 + $0x100] sm:$0xff] %v716
    %875 = vst [vmem:[#allocation7 + $0x108] sm:$0xff] %v719
    %876 = vst [vmem:[#allocation7 + $0x110] sm:$0xff] %v724
    %877 = vst [vmem:[#allocation7 + $0x118] sm:$0xff] %v727
    %878 = vst [vmem:[#allocation7 + $0x120] sm:$0xff] %v732
    %879 = vst [vmem:[#allocation7 + $0x128] sm:$0xff] %v735
    %880 = vst [vmem:[#allocation7 + $0x130] sm:$0xff] %v740
    %881 = vst [vmem:[#allocation7 + $0x138] sm:$0xff] %v743
    %882 = vst [vmem:[#allocation7 + $0x140] sm:$0xff] %v748
    %883 = vst [vmem:[#allocation7 + $0x148] sm:$0xff] %v751
    %884 = vst [vmem:[#allocation7 + $0x150] sm:$0xff] %v756
    %885 = vst [vmem:[#allocation7 + $0x158] sm:$0xff] %v759
    %886 = vst [vmem:[#allocation7 + $0x160] sm:$0xff] %v764
    %887 = vst [vmem:[#allocation7 + $0x168] sm:$0xff] %v767
    %888 = vst [vmem:[#allocation7 + $0x170] sm:$0xff] %v772
    %889 = vst [vmem:[#allocation7 + $0x178] sm:$0xff] %v775
    %890 = vst [vmem:[#allocation7 + $0x180] sm:$0xff] %v780
    %891 = vst [vmem:[#allocation7 + $0x188] sm:$0xff] %v783
    %892 = vst [vmem:[#allocation7 + $0x190] sm:$0xff] %v788
    %893 = vst [vmem:[#allocation7 + $0x198] sm:$0xff] %v791
    %894 = vst [vmem:[#allocation7 + $0x1a0] sm:$0xff] %v796
    %895 = vst [vmem:[#allocation7 + $0x1a8] sm:$0xff] %v799
    %896 = vst [vmem:[#allocation7 + $0x1b0] sm:$0xff] %v804
    %897 = vst [vmem:[#allocation7 + $0x1b8] sm:$0xff] %v807
    %898 = vst [vmem:[#allocation7 + $0x1c0] sm:$0xff] %v812
    %899 = vst [vmem:[#allocation7 + $0x1c8] sm:$0xff] %v815
    %900 = vst [vmem:[#allocation7 + $0x1d0] sm:$0xff] %v820
    %901 = vst [vmem:[#allocation7 + $0x1d8] sm:$0xff] %v823
    %902 = vst [vmem:[#allocation7 + $0x1e0] sm:$0xff] %v828
    %903 = vst [vmem:[#allocation7 + $0x1e8] sm:$0xff] %v831
    %904 = vst [vmem:[#allocation7 + $0x1f0] sm:$0xff] %v836
    %905 = vst [vmem:[#allocation7 + $0x1f8] sm:$0xff] %v839
    // Predicated region
    $region18: #{tpu_custom_call.1} parent=1 // pred_check
      _
    $region19: #{tpu_custom_call.1} parent=1 // pred_check_branch
      %907 = sbr.rel (0) target = $region21
    $region20: #{tpu_custom_call.1} parent=1 // pred_region
      %s909 = ssub.s32 8192, 8192
      %910 = vsyncadd [#allocation4], %s909
      %s911 = sshll.u32 [#allocation7], 4
      %s912 = int_to_ptr.vmem [resolvable:$true] %s911
      %917 = dma.vmem_to_hbm [thread:$0]  %s912, 8192, %s2, [#allocation4], 128, 128, 8
    $region21: #{tpu_custom_call.1} parent=1 // pred_fallthru
      _
    // Predicated region
    $region22: #{tpu_custom_call.1} parent=1 // pred_check
      _
    $region23: #{tpu_custom_call.1} parent=1 // pred_check_branch
      %919 = sbr.rel (0) target = $region25
    $region24: #{tpu_custom_call.1} parent=1 // pred_region
      %920 = dma.done [#allocation4], 8192
    $region25: #{tpu_custom_call.1} parent=1 // pred_fallthru
      _
    %921 = vsyncpa [#allocation3], 1
    %922 = vsyncpa [#allocation6], 1
    %923 = vsyncpa [#allocation4], 1

</llo_original>
